<compile_context>
chip_gen: v6e
topology: v6e:2x2x1
jax: 0.10.0
libtpu: 0.0.40
codegen_flags: <defaults>
</compile_context>

<pallas_src>
import functools

import jax
import jax.numpy as jnp
from jax.experimental import pallas as pl
from jax.experimental.pallas import tpu as pltpu


# ----------------------------------------------------------------------------
# Pallas kernel
# ----------------------------------------------------------------------------

def _inner_product_decoder_kernel(idx_ref, nid_ref, zt_ref, o_ref):
    """One edge tile: fused src|dst one-hot MXU gather, inner product, sigmoid.

    idx_ref : int32  [1, 2*TE]      (src indices then dst indices, edges on lanes)
    nid_ref : int32  [N_pad, 1]     (node-id column, grid-resident)
    zt_ref  : bf16   [D_pad, N_pad] (z transposed + zero-padded, grid-resident)
    o_ref   : f32    [1, TE]        (sigmoid scores, lane-dense)
    """
    te2 = idx_ref.shape[1]
    te = te2 // 2

    # Fused one-hot gather matrix, built directly in bf16 (exact 0/1 values):
    #   oh[n, e] = (idx[e] == n)
    oh = (idx_ref[...] == nid_ref[...]).astype(jnp.bfloat16)        # [N_pad, 2*TE]

    # Single MXU gather with f32 accumulation:
    #   zcat_t[d, e] = z[idx[e], d]
    zcat_t = jnp.dot(zt_ref[...], oh,
                     preferred_element_type=jnp.float32)            # [D_pad, 2*TE]

    zs_t = zcat_t[:, :te]                                           # [D_pad, TE] f32
    zd_t = zcat_t[:, te:]                                           # [D_pad, TE] f32

    # Inner product over the latent dim (sublane reduction -> lane-dense row), f32.
    s = jnp.sum(zs_t * zd_t, axis=0, keepdims=True)                 # [1, TE]

    # Sigmoid via EUP (exp + approximate reciprocal), no VALU divide.
    o_ref[...] = pl.reciprocal(1.0 + jnp.exp(-s), approx=True)


# ----------------------------------------------------------------------------
# Wrapper
# ----------------------------------------------------------------------------

def _round_up(x, m):
    return ((x + m - 1) // m) * m


@functools.partial(jax.jit, static_argnames=("edge_tile",))
def vgae_decoder(z, edge_index, *, edge_tile=512):
    """Pallas implementation of VGAE_decoder.forward(z, edge_index) -> sigmoid scores [E]."""
    if edge_tile <= 0 or edge_tile % 128 != 0:
        raise ValueError(f"edge_tile must be a positive multiple of 128, got {edge_tile}")

    n, d = z.shape
    e = edge_index.shape[1]

    n_pad = _round_up(max(n, 128), 128)              # lane-aligned node count
    d_pad = _round_up(max(d, 16), 16)                # bf16 sublane-packed latent dim
    e_pad = _round_up(max(e, edge_tile), edge_tile)  # lane-aligned edge count
    num_tiles = e_pad // edge_tile

    # Layout plumbing (outside the kernel): transpose + zero-pad z -> bf16 [D_pad, N_pad].
    zt = jnp.zeros((d_pad, n_pad), jnp.bfloat16).at[:d, :n].set(z.T.astype(jnp.bfloat16))

    # Node-id column (grid-resident); replaces per-step broadcasted_iota in the kernel.
    node_ids = jnp.arange(n_pad, dtype=jnp.int32).reshape(n_pad, 1)

    # Pad edge endpoints; fill value n_pad matches no node id -> padded scores are dropped.
    src = edge_index[0].astype(jnp.int32)
    dst = edge_index[1].astype(jnp.int32)
    src_p = jnp.full((e_pad,), n_pad, jnp.int32).at[:e].set(src)
    dst_p = jnp.full((e_pad,), n_pad, jnp.int32).at[:e].set(dst)

    # Fuse src/dst per tile: tile i carries [src_tile_i | dst_tile_i] on 2*edge_tile lanes.
    idx_p = jnp.stack(
        [src_p.reshape(num_tiles, edge_tile), dst_p.reshape(num_tiles, edge_tile)],
        axis=1,
    ).reshape(1, 2 * e_pad)

    scores = pl.pallas_call(
        _inner_product_decoder_kernel,
        out_shape=jax.ShapeDtypeStruct((1, e_pad), jnp.float32),
        grid=(num_tiles,),
        in_specs=[
            pl.BlockSpec((1, 2 * edge_tile), lambda i: (0, i)),   # fused src|dst indices
            pl.BlockSpec((n_pad, 1), lambda i: (0, 0)),           # node ids, grid-resident
            pl.BlockSpec((d_pad, n_pad), lambda i: (0, 0)),       # zT (bf16), grid-resident
        ],
        out_specs=pl.BlockSpec((1, edge_tile), lambda i: (0, i)),
        compiler_params=pltpu.CompilerParams(
            dimension_semantics=("parallel",)),
    )(idx_p, node_ids, zt)

    return scores[0, :e]


# ----------------------------------------------------------------------------
# main
# ----------------------------------------------------------------------------

if __name__ == "__main__":
    key = jax.random.PRNGKey(0)
    kz, ks, kd = jax.random.split(key, 3)

    n_nodes, lat_dim, n_edges = 24, 16, 200

    z = jax.random.normal(kz, (n_nodes, lat_dim), jnp.float32)
    src = jax.random.randint(ks, (n_edges,), 0, n_nodes)
    dst = jax.random.randint(kd, (n_edges,), 0, n_nodes)
    edge_index = jnp.stack([src, dst]).astype(jnp.int32)

    out = vgae_decoder(z, edge_index)
    out = jax.block_until_ready(out)

    # Plain-JAX references of the PyTorch module.
    ref_f32 = jax.nn.sigmoid(jnp.sum(z[src] * z[dst], axis=-1))
    z_bf = z.astype(jnp.bfloat16).astype(jnp.float32)
    ref_bf16 = jax.nn.sigmoid(jnp.sum(z_bf[src] * z_bf[dst], axis=-1))

    assert out.shape == (n_edges,)
    assert bool(jnp.all(jnp.isfinite(out)))
    assert bool(jnp.all((out >= 0.0) & (out <= 1.0)))
    # Tight vs. bf16-consistent reference (only approx-reciprocal error remains).
    assert bool(jnp.max(jnp.abs(out - ref_bf16)) < 5e-3)
    # Loose vs. full-f32 reference (bf16 gather operands lose ~3 mantissa digits).
    assert bool(jnp.max(jnp.abs(out - ref_f32)) < 2e-2)

    print("KERNEL_OK")
</pallas_src>

<mosaic_0001>
module attributes {stable_mosaic.version = 11 : i64} {
  func.func @_inner_product_decoder_kernel(%arg0: i32, %arg1: memref<1x1024xi32, #tpu.memory_space<vmem>>, %arg2: memref<128x1xi32, #tpu.memory_space<vmem>>, %arg3: memref<16x128xbf16, #tpu.memory_space<vmem>>, %arg4: memref<1x512xf32, #tpu.memory_space<vmem>>) attributes {dimension_semantics = [#tpu.dimension_semantics<parallel>], iteration_bounds = array<i64: 1>, scalar_prefetch = 0 : i64, scratch_operands = 0 : i64, tpu.core_type = #tpu.core_type<tc>, window_params = [{transform_indices = @transform_0, window_bounds = array<i64: 1, 1024>}, {pipeline_mode = #tpu.pipeline_mode<synchronous>, transform_indices = @transform_1, window_bounds = array<i64: 128, 1>}, {pipeline_mode = #tpu.pipeline_mode<synchronous>, transform_indices = @transform_2, window_bounds = array<i64: 16, 128>}, {transform_indices = @transform_3, window_bounds = array<i64: 1, 512>}]} {
    %c0 = arith.constant 0 : index
    %c0_0 = arith.constant 0 : index
    %0 = vector.load %arg1[%c0, %c0_0] : memref<1x1024xi32, #tpu.memory_space<vmem>>, vector<1x1024xi32>
    %c0_1 = arith.constant 0 : index
    %c0_2 = arith.constant 0 : index
    %1 = vector.load %arg2[%c0_1, %c0_2] : memref<128x1xi32, #tpu.memory_space<vmem>>, vector<128x1xi32>
    %2 = vector.broadcast %0 : vector<1x1024xi32> to vector<128x1024xi32>
    %3 = vector.broadcast %1 : vector<128x1xi32> to vector<128x1024xi32>
    %4 = arith.cmpi eq, %2, %3 : vector<128x1024xi32>
    %5 = arith.extui %4 : vector<128x1024xi1> to vector<128x1024xi32>
    %6 = arith.sitofp %5 : vector<128x1024xi32> to vector<128x1024xf32>
    %7 = arith.truncf %6 : vector<128x1024xf32> to vector<128x1024xbf16>
    %c0_3 = arith.constant 0 : index
    %c0_4 = arith.constant 0 : index
    %8 = vector.load %arg3[%c0_3, %c0_4] : memref<16x128xbf16, #tpu.memory_space<vmem>>, vector<16x128xbf16>
    %cst = arith.constant dense<0.000000e+00> : vector<16x1024xf32>
    %9 = tpu.matmul %8, %7, %cst {dimension_numbers = #tpu.dot_dimension_numbers<[1], [0], [0], [1], [0, 0, 1, 1], [], []>} : vector<16x128xbf16>, vector<128x1024xbf16>, vector<16x1024xf32> -> vector<16x1024xf32>
    %10 = vector.extract_strided_slice %9 {offsets = [0, 0], sizes = [16, 512], strides = [1, 1]} : vector<16x1024xf32> to vector<16x512xf32>
    %11 = vector.extract_strided_slice %9 {offsets = [0, 512], sizes = [16, 512], strides = [1, 1]} : vector<16x1024xf32> to vector<16x512xf32>
    %12 = arith.mulf %10, %11 : vector<16x512xf32>
    %cst_5 = arith.constant dense<0.000000e+00> : vector<512xf32>
    %13 = vector.multi_reduction <add>, %12, %cst_5 [0] : vector<16x512xf32> to vector<512xf32>
    %14 = vector.shape_cast %13 : vector<512xf32> to vector<1x512xf32>
    %cst_6 = arith.constant 0.000000e+00 : f32
    %15 = vector.broadcast %cst_6 : f32 to vector<1x512xf32>
    %16 = arith.subf %15, %14 : vector<1x512xf32>
    %17 = math.exp %16 : vector<1x512xf32>
    %cst_7 = arith.constant 1.000000e+00 : f32
    %18 = vector.broadcast %cst_7 : f32 to vector<1x512xf32>
    %19 = arith.addf %18, %17 : vector<1x512xf32>
    %20 = tpu.reciprocal %19 {approx = true} : vector<1x512xf32> -> vector<1x512xf32>
    %c0_8 = arith.constant 0 : index
    %c0_9 = arith.constant 0 : index
    %21 = vector.load %arg4[%c0_8, %c0_9] : memref<1x512xf32, #tpu.memory_space<vmem>>, vector<1x512xf32>
    tpu.vector_store %arg4[%c0_8, %c0_9], %20 {strides = array<i32>} : memref<1x512xf32, #tpu.memory_space<vmem>>, vector<1x512xf32>,
    return
  }
  func.func @transform_0(%arg0: i32) -> (i32, i32) {
    %c0_i32 = arith.constant 0 : i32
    %c0_i32_0 = arith.constant 0 : i32
    return %c0_i32, %arg0 : i32, i32
  }
  func.func @transform_1(%arg0: i32) -> (i32, i32) {
    %c0_i32 = arith.constant 0 : i32
    %c0_i32_0 = arith.constant 0 : i32
    %c0_i32_1 = arith.constant 0 : i32
    return %c0_i32, %c0_i32_0 : i32, i32
  }
  func.func @transform_2(%arg0: i32) -> (i32, i32) {
    %c0_i32 = arith.constant 0 : i32
    %c0_i32_0 = arith.constant 0 : i32
    %c0_i32_1 = arith.constant 0 : i32
    return %c0_i32, %c0_i32_0 : i32, i32
  }
  func.func @transform_3(%arg0: i32) -> (i32, i32) {
    %c0_i32 = arith.constant 0 : i32
    %c0_i32_0 = arith.constant 0 : i32
    return %c0_i32, %arg0 : i32, i32
  }
}

</mosaic_0001>

<llo_original>
// kernel: vgae_decoder.1
$region0: #{vgae_decoder.1}
  #allocation0 [shape = 'u32[]', space=smem, size = 0x4, offset = 0x4, fixed_abs, tag = 'smem constant byte address 0x4 - core index']
  #allocation1 [shape = 'u32[144,128]{1,0:T(1,128)}', space=vmem, size = 0x12000, scoped, tag = 'internal scratch']
  %s0 = inlined_call_operand.vmem [shape: s32[1,1024], index: 0, kind: input, shape index: {}]
  %s1 = inlined_call_operand.vmem [shape: s32[128,1], index: 1, kind: input, shape index: {}]
  %s2 = inlined_call_operand.vmem [shape: bf16[16,128], index: 2, kind: input, shape index: {}]
  %s3 = inlined_call_operand.vmem [shape: f32[1,512], index: 3, kind: output, shape index: {}]
  %s4 = sld [smem:[#allocation0]]
  $region22: #{vgae_decoder.1} parent=0
    _
  %s6 = ssub.s32 1, %s4
  %s7 = scalar_select 0, %s6, %s4
  // Predicated region
  $region2: #{vgae_decoder.1} parent=0 // pred_check
    _
  $region3: #{vgae_decoder.1} parent=0 // pred_check_branch
    %9 = sbr.rel (0) target = $region5
  $region4: #{vgae_decoder.1} parent=0 // pred_region
    _
  $region5: #{vgae_decoder.1} parent=0 // pred_fallthru
    _
  // Predicated region
  $region6: #{vgae_decoder.1} parent=0 // pred_check
    _
  $region7: #{vgae_decoder.1} parent=0 // pred_check_branch
    %11 = sbr.rel (0) target = $region9
  $region8: #{vgae_decoder.1} parent=0 // pred_region
    _
  $region9: #{vgae_decoder.1} parent=0 // pred_fallthru
    _
  // Predicated region
  $region10: #{vgae_decoder.1} parent=0 // pred_check
    _
  $region11: #{vgae_decoder.1} parent=0 // pred_check_branch
    %13 = sbr.rel (0) target = $region13
  $region12: #{vgae_decoder.1} parent=0 // pred_region
    _
  $region13: #{vgae_decoder.1} parent=0 // pred_fallthru
    _
  %v15 = vld [vmem:[%s0] sm:$0xff]
  %v16 = vld [vmem:[%s1] sm:$0xff]
  %v17 = vld [vmem:[%s1 + $0x8] sm:$0xff]
  %v18 = vld [vmem:[%s1 + $0x10] sm:$0xff]
  %v19 = vld [vmem:[%s1 + $0x18] sm:$0xff]
  %v20 = vld [vmem:[%s1 + $0x20] sm:$0xff]
  %v21 = vld [vmem:[%s1 + $0x28] sm:$0xff]
  %v22 = vld [vmem:[%s1 + $0x30] sm:$0xff]
  %v23 = vld [vmem:[%s1 + $0x38] sm:$0xff]
  %v24 = vld [vmem:[%s1 + $0x40] sm:$0xff]
  %v25 = vld [vmem:[%s1 + $0x48] sm:$0xff]
  %v26 = vld [vmem:[%s1 + $0x50] sm:$0xff]
  %v27 = vld [vmem:[%s1 + $0x58] sm:$0xff]
  %v28 = vld [vmem:[%s1 + $0x60] sm:$0xff]
  %v29 = vld [vmem:[%s1 + $0x68] sm:$0xff]
  %v30 = vld [vmem:[%s1 + $0x70] sm:$0xff]
  %v31 = vld [vmem:[%s1 + $0x78] sm:$0xff]
  %v32 = vlaneseq
  %v33 = vshrl.u32 %v32, 7
  %v34 = vsub.s32 0, %v33
  %v35 = vrot.slane %v15, %v34
  %v36 = vlaneseq
  %v37 = vshrl.u32 %v36, 7
  %v38 = vsub.s32 1, %v37
  %v39 = vrot.slane %v15, %v38
  %v40 = vlaneseq
  %v41 = vshrl.u32 %v40, 7
  %v42 = vsub.s32 2, %v41
  %v43 = vrot.slane %v15, %v42
  %v44 = vlaneseq
  %v45 = vshrl.u32 %v44, 7
  %v46 = vsub.s32 3, %v45
  %v47 = vrot.slane %v15, %v46
  %v48 = vlaneseq
  %v49 = vshrl.u32 %v48, 7
  %v50 = vsub.s32 4, %v49
  %v51 = vrot.slane %v15, %v50
  %v52 = vlaneseq
  %v53 = vshrl.u32 %v52, 7
  %v54 = vsub.s32 5, %v53
  %v55 = vrot.slane %v15, %v54
  %v56 = vlaneseq
  %v57 = vshrl.u32 %v56, 7
  %v58 = vsub.s32 6, %v57
  %v59 = vrot.slane %v15, %v58
  %v60 = vlaneseq
  %v61 = vshrl.u32 %v60, 7
  %v62 = vsub.s32 7, %v61
  %v63 = vrot.slane %v15, %v62
  %64 = vset.pattern.permute.xlu0 0
  %65 = vperm.xlu0 %64, %v16
  %v66 = vpop.permute.xlu0 %65
  %67 = vset.pattern.permute.xlu0 0
  %68 = vperm.xlu0 %67, %v17
  %v69 = vpop.permute.xlu0 %68
  %70 = vset.pattern.permute.xlu0 0
  %71 = vperm.xlu0 %70, %v18
  %v72 = vpop.permute.xlu0 %71
  %73 = vset.pattern.permute.xlu0 0
  %74 = vperm.xlu0 %73, %v19
  %v75 = vpop.permute.xlu0 %74
  %76 = vset.pattern.permute.xlu0 0
  %77 = vperm.xlu0 %76, %v20
  %v78 = vpop.permute.xlu0 %77
  %79 = vset.pattern.permute.xlu0 0
  %80 = vperm.xlu0 %79, %v21
  %v81 = vpop.permute.xlu0 %80
  %82 = vset.pattern.permute.xlu0 0
  %83 = vperm.xlu0 %82, %v22
  %v84 = vpop.permute.xlu0 %83
  %85 = vset.pattern.permute.xlu0 0
  %86 = vperm.xlu0 %85, %v23
  %v87 = vpop.permute.xlu0 %86
  %88 = vset.pattern.permute.xlu0 0
  %89 = vperm.xlu0 %88, %v24
  %v90 = vpop.permute.xlu0 %89
  %91 = vset.pattern.permute.xlu0 0
  %92 = vperm.xlu0 %91, %v25
  %v93 = vpop.permute.xlu0 %92
  %94 = vset.pattern.permute.xlu0 0
  %95 = vperm.xlu0 %94, %v26
  %v96 = vpop.permute.xlu0 %95
  %97 = vset.pattern.permute.xlu0 0
  %98 = vperm.xlu0 %97, %v27
  %v99 = vpop.permute.xlu0 %98
  %100 = vset.pattern.permute.xlu0 0
  %101 = vperm.xlu0 %100, %v28
  %v102 = vpop.permute.xlu0 %101
  %103 = vset.pattern.permute.xlu0 0
  %104 = vperm.xlu0 %103, %v29
  %v105 = vpop.permute.xlu0 %104
  %106 = vset.pattern.permute.xlu0 0
  %107 = vperm.xlu0 %106, %v30
  %v108 = vpop.permute.xlu0 %107
  %109 = vset.pattern.permute.xlu0 0
  %110 = vperm.xlu0 %109, %v31
  %v111 = vpop.permute.xlu0 %110
  %vm112 = vcmp.eq.s32.totalorder %v35, %v66
  %vm113 = vcmp.eq.s32.totalorder %v39, %v66
  %vm114 = vcmp.eq.s32.totalorder %v43, %v66
  %vm115 = vcmp.eq.s32.totalorder %v47, %v66
  %vm116 = vcmp.eq.s32.totalorder %v51, %v66
  %vm117 = vcmp.eq.s32.totalorder %v55, %v66
  %vm118 = vcmp.eq.s32.totalorder %v59, %v66
  %vm119 = vcmp.eq.s32.totalorder %v63, %v66
  %vm120 = vcmp.eq.s32.totalorder %v35, %v69
  %vm121 = vcmp.eq.s32.totalorder %v39, %v69
  %vm122 = vcmp.eq.s32.totalorder %v43, %v69
  %vm123 = vcmp.eq.s32.totalorder %v47, %v69
  %vm124 = vcmp.eq.s32.totalorder %v51, %v69
  %vm125 = vcmp.eq.s32.totalorder %v55, %v69
  %vm126 = vcmp.eq.s32.totalorder %v59, %v69
  %vm127 = vcmp.eq.s32.totalorder %v63, %v69
  %vm128 = vcmp.eq.s32.totalorder %v35, %v72
  %vm129 = vcmp.eq.s32.totalorder %v39, %v72
  %vm130 = vcmp.eq.s32.totalorder %v43, %v72
  %vm131 = vcmp.eq.s32.totalorder %v47, %v72
  %vm132 = vcmp.eq.s32.totalorder %v51, %v72
  %vm133 = vcmp.eq.s32.totalorder %v55, %v72
  %vm134 = vcmp.eq.s32.totalorder %v59, %v72
  %vm135 = vcmp.eq.s32.totalorder %v63, %v72
  %vm136 = vcmp.eq.s32.totalorder %v35, %v75
  %vm137 = vcmp.eq.s32.totalorder %v39, %v75
  %vm138 = vcmp.eq.s32.totalorder %v43, %v75
  %vm139 = vcmp.eq.s32.totalorder %v47, %v75
  %vm140 = vcmp.eq.s32.totalorder %v51, %v75
  %vm141 = vcmp.eq.s32.totalorder %v55, %v75
  %vm142 = vcmp.eq.s32.totalorder %v59, %v75
  %vm143 = vcmp.eq.s32.totalorder %v63, %v75
  %vm144 = vcmp.eq.s32.totalorder %v35, %v78
  %vm145 = vcmp.eq.s32.totalorder %v39, %v78
  %vm146 = vcmp.eq.s32.totalorder %v43, %v78
  %vm147 = vcmp.eq.s32.totalorder %v47, %v78
  %vm148 = vcmp.eq.s32.totalorder %v51, %v78
  %vm149 = vcmp.eq.s32.totalorder %v55, %v78
  %vm150 = vcmp.eq.s32.totalorder %v59, %v78
  %vm151 = vcmp.eq.s32.totalorder %v63, %v78
  %vm152 = vcmp.eq.s32.totalorder %v35, %v81
  %vm153 = vcmp.eq.s32.totalorder %v39, %v81
  %vm154 = vcmp.eq.s32.totalorder %v43, %v81
  %vm155 = vcmp.eq.s32.totalorder %v47, %v81
  %vm156 = vcmp.eq.s32.totalorder %v51, %v81
  %vm157 = vcmp.eq.s32.totalorder %v55, %v81
  %vm158 = vcmp.eq.s32.totalorder %v59, %v81
  %vm159 = vcmp.eq.s32.totalorder %v63, %v81
  %vm160 = vcmp.eq.s32.totalorder %v35, %v84
  %vm161 = vcmp.eq.s32.totalorder %v39, %v84
  %vm162 = vcmp.eq.s32.totalorder %v43, %v84
  %vm163 = vcmp.eq.s32.totalorder %v47, %v84
  %vm164 = vcmp.eq.s32.totalorder %v51, %v84
  %vm165 = vcmp.eq.s32.totalorder %v55, %v84
  %vm166 = vcmp.eq.s32.totalorder %v59, %v84
  %vm167 = vcmp.eq.s32.totalorder %v63, %v84
  %vm168 = vcmp.eq.s32.totalorder %v35, %v87
  %vm169 = vcmp.eq.s32.totalorder %v39, %v87
  %vm170 = vcmp.eq.s32.totalorder %v43, %v87
  %vm171 = vcmp.eq.s32.totalorder %v47, %v87
  %vm172 = vcmp.eq.s32.totalorder %v51, %v87
  %vm173 = vcmp.eq.s32.totalorder %v55, %v87
  %vm174 = vcmp.eq.s32.totalorder %v59, %v87
  %vm175 = vcmp.eq.s32.totalorder %v63, %v87
  %vm176 = vcmp.eq.s32.totalorder %v35, %v90
  %vm177 = vcmp.eq.s32.totalorder %v39, %v90
  %vm178 = vcmp.eq.s32.totalorder %v43, %v90
  %vm179 = vcmp.eq.s32.totalorder %v47, %v90
  %vm180 = vcmp.eq.s32.totalorder %v51, %v90
  %vm181 = vcmp.eq.s32.totalorder %v55, %v90
  %vm182 = vcmp.eq.s32.totalorder %v59, %v90
  %vm183 = vcmp.eq.s32.totalorder %v63, %v90
  %vm184 = vcmp.eq.s32.totalorder %v35, %v93
  %vm185 = vcmp.eq.s32.totalorder %v39, %v93
  %vm186 = vcmp.eq.s32.totalorder %v43, %v93
  %vm187 = vcmp.eq.s32.totalorder %v47, %v93
  %vm188 = vcmp.eq.s32.totalorder %v51, %v93
  %vm189 = vcmp.eq.s32.totalorder %v55, %v93
  %vm190 = vcmp.eq.s32.totalorder %v59, %v93
  %vm191 = vcmp.eq.s32.totalorder %v63, %v93
  %vm192 = vcmp.eq.s32.totalorder %v35, %v96
  %vm193 = vcmp.eq.s32.totalorder %v39, %v96
  %vm194 = vcmp.eq.s32.totalorder %v43, %v96
  %vm195 = vcmp.eq.s32.totalorder %v47, %v96
  %vm196 = vcmp.eq.s32.totalorder %v51, %v96
  %vm197 = vcmp.eq.s32.totalorder %v55, %v96
  %vm198 = vcmp.eq.s32.totalorder %v59, %v96
  %vm199 = vcmp.eq.s32.totalorder %v63, %v96
  %vm200 = vcmp.eq.s32.totalorder %v35, %v99
  %vm201 = vcmp.eq.s32.totalorder %v39, %v99
  %vm202 = vcmp.eq.s32.totalorder %v43, %v99
  %vm203 = vcmp.eq.s32.totalorder %v47, %v99
  %vm204 = vcmp.eq.s32.totalorder %v51, %v99
  %vm205 = vcmp.eq.s32.totalorder %v55, %v99
  %vm206 = vcmp.eq.s32.totalorder %v59, %v99
  %vm207 = vcmp.eq.s32.totalorder %v63, %v99
  %vm208 = vcmp.eq.s32.totalorder %v35, %v102
  %vm209 = vcmp.eq.s32.totalorder %v39, %v102
  %vm210 = vcmp.eq.s32.totalorder %v43, %v102
  %vm211 = vcmp.eq.s32.totalorder %v47, %v102
  %vm212 = vcmp.eq.s32.totalorder %v51, %v102
  %vm213 = vcmp.eq.s32.totalorder %v55, %v102
  %vm214 = vcmp.eq.s32.totalorder %v59, %v102
  %vm215 = vcmp.eq.s32.totalorder %v63, %v102
  %vm216 = vcmp.eq.s32.totalorder %v35, %v105
  %vm217 = vcmp.eq.s32.totalorder %v39, %v105
  %vm218 = vcmp.eq.s32.totalorder %v43, %v105
  %vm219 = vcmp.eq.s32.totalorder %v47, %v105
  %vm220 = vcmp.eq.s32.totalorder %v51, %v105
  %vm221 = vcmp.eq.s32.totalorder %v55, %v105
  %vm222 = vcmp.eq.s32.totalorder %v59, %v105
  %vm223 = vcmp.eq.s32.totalorder %v63, %v105
  %vm224 = vcmp.eq.s32.totalorder %v35, %v108
  %vm225 = vcmp.eq.s32.totalorder %v39, %v108
  %vm226 = vcmp.eq.s32.totalorder %v43, %v108
  %vm227 = vcmp.eq.s32.totalorder %v47, %v108
  %vm228 = vcmp.eq.s32.totalorder %v51, %v108
  %vm229 = vcmp.eq.s32.totalorder %v55, %v108
  %vm230 = vcmp.eq.s32.totalorder %v59, %v108
  %vm231 = vcmp.eq.s32.totalorder %v63, %v108
  %vm232 = vcmp.eq.s32.totalorder %v35, %v111
  %vm233 = vcmp.eq.s32.totalorder %v39, %v111
  %vm234 = vcmp.eq.s32.totalorder %v43, %v111
  %vm235 = vcmp.eq.s32.totalorder %v47, %v111
  %vm236 = vcmp.eq.s32.totalorder %v51, %v111
  %vm237 = vcmp.eq.s32.totalorder %v55, %v111
  %vm238 = vcmp.eq.s32.totalorder %v59, %v111
  %vm239 = vcmp.eq.s32.totalorder %v63, %v111
  %v240 = vsel %vm112, 1, 0
  %v241 = vsel %vm113, 1, 0
  %v242 = vsel %vm114, 1, 0
  %v243 = vsel %vm115, 1, 0
  %v244 = vsel %vm116, 1, 0
  %v245 = vsel %vm117, 1, 0
  %v246 = vsel %vm118, 1, 0
  %v247 = vsel %vm119, 1, 0
  %v248 = vsel %vm120, 1, 0
  %v249 = vsel %vm121, 1, 0
  %v250 = vsel %vm122, 1, 0
  %v251 = vsel %vm123, 1, 0
  %v252 = vsel %vm124, 1, 0
  %v253 = vsel %vm125, 1, 0
  %v254 = vsel %vm126, 1, 0
  %v255 = vsel %vm127, 1, 0
  %v256 = vsel %vm128, 1, 0
  %v257 = vsel %vm129, 1, 0
  %v258 = vsel %vm130, 1, 0
  %v259 = vsel %vm131, 1, 0
  %v260 = vsel %vm132, 1, 0
  %v261 = vsel %vm133, 1, 0
  %v262 = vsel %vm134, 1, 0
  %v263 = vsel %vm135, 1, 0
  %v264 = vsel %vm136, 1, 0
  %v265 = vsel %vm137, 1, 0
  %v266 = vsel %vm138, 1, 0
  %v267 = vsel %vm139, 1, 0
  %v268 = vsel %vm140, 1, 0
  %v269 = vsel %vm141, 1, 0
  %v270 = vsel %vm142, 1, 0
  %v271 = vsel %vm143, 1, 0
  %v272 = vsel %vm144, 1, 0
  %v273 = vsel %vm145, 1, 0
  %v274 = vsel %vm146, 1, 0
  %v275 = vsel %vm147, 1, 0
  %v276 = vsel %vm148, 1, 0
  %v277 = vsel %vm149, 1, 0
  %v278 = vsel %vm150, 1, 0
  %v279 = vsel %vm151, 1, 0
  %v280 = vsel %vm152, 1, 0
  %v281 = vsel %vm153, 1, 0
  %v282 = vsel %vm154, 1, 0
  %v283 = vsel %vm155, 1, 0
  %v284 = vsel %vm156, 1, 0
  %v285 = vsel %vm157, 1, 0
  %v286 = vsel %vm158, 1, 0
  %v287 = vsel %vm159, 1, 0
  %v288 = vsel %vm160, 1, 0
  %v289 = vsel %vm161, 1, 0
  %v290 = vsel %vm162, 1, 0
  %v291 = vsel %vm163, 1, 0
  %v292 = vsel %vm164, 1, 0
  %v293 = vsel %vm165, 1, 0
  %v294 = vsel %vm166, 1, 0
  %v295 = vsel %vm167, 1, 0
  %v296 = vsel %vm168, 1, 0
  %v297 = vsel %vm169, 1, 0
  %v298 = vsel %vm170, 1, 0
  %v299 = vsel %vm171, 1, 0
  %v300 = vsel %vm172, 1, 0
  %v301 = vsel %vm173, 1, 0
  %v302 = vsel %vm174, 1, 0
  %v303 = vsel %vm175, 1, 0
  %v304 = vsel %vm176, 1, 0
  %v305 = vsel %vm177, 1, 0
  %v306 = vsel %vm178, 1, 0
  %v307 = vsel %vm179, 1, 0
  %v308 = vsel %vm180, 1, 0
  %v309 = vsel %vm181, 1, 0
  %v310 = vsel %vm182, 1, 0
  %v311 = vsel %vm183, 1, 0
  %v312 = vsel %vm184, 1, 0
  %v313 = vsel %vm185, 1, 0
  %v314 = vsel %vm186, 1, 0
  %v315 = vsel %vm187, 1, 0
  %v316 = vsel %vm188, 1, 0
  %v317 = vsel %vm189, 1, 0
  %v318 = vsel %vm190, 1, 0
  %v319 = vsel %vm191, 1, 0
  %v320 = vsel %vm192, 1, 0
  %v321 = vsel %vm193, 1, 0
  %v322 = vsel %vm194, 1, 0
  %v323 = vsel %vm195, 1, 0
  %v324 = vsel %vm196, 1, 0
  %v325 = vsel %vm197, 1, 0
  %v326 = vsel %vm198, 1, 0
  %v327 = vsel %vm199, 1, 0
  %v328 = vsel %vm200, 1, 0
  %v329 = vsel %vm201, 1, 0
  %v330 = vsel %vm202, 1, 0
  %v331 = vsel %vm203, 1, 0
  %v332 = vsel %vm204, 1, 0
  %v333 = vsel %vm205, 1, 0
  %v334 = vsel %vm206, 1, 0
  %v335 = vsel %vm207, 1, 0
  %v336 = vsel %vm208, 1, 0
  %v337 = vsel %vm209, 1, 0
  %v338 = vsel %vm210, 1, 0
  %v339 = vsel %vm211, 1, 0
  %v340 = vsel %vm212, 1, 0
  %v341 = vsel %vm213, 1, 0
  %v342 = vsel %vm214, 1, 0
  %v343 = vsel %vm215, 1, 0
  %v344 = vsel %vm216, 1, 0
  %v345 = vsel %vm217, 1, 0
  %v346 = vsel %vm218, 1, 0
  %v347 = vsel %vm219, 1, 0
  %v348 = vsel %vm220, 1, 0
  %v349 = vsel %vm221, 1, 0
  %v350 = vsel %vm222, 1, 0
  %v351 = vsel %vm223, 1, 0
  %v352 = vsel %vm224, 1, 0
  %v353 = vsel %vm225, 1, 0
  %v354 = vsel %vm226, 1, 0
  %v355 = vsel %vm227, 1, 0
  %v356 = vsel %vm228, 1, 0
  %v357 = vsel %vm229, 1, 0
  %v358 = vsel %vm230, 1, 0
  %v359 = vsel %vm231, 1, 0
  %v360 = vsel %vm232, 1, 0
  %v361 = vsel %vm233, 1, 0
  %v362 = vsel %vm234, 1, 0
  %v363 = vsel %vm235, 1, 0
  %v364 = vsel %vm236, 1, 0
  %v365 = vsel %vm237, 1, 0
  %v366 = vsel %vm238, 1, 0
  %v367 = vsel %vm239, 1, 0
  %v368 = vcvt.s32.f32 %v240
  %v369 = vcvt.s32.f32 %v241
  %v370 = vcvt.s32.f32 %v242
  %v371 = vcvt.s32.f32 %v243
  %v372 = vcvt.s32.f32 %v244
  %v373 = vcvt.s32.f32 %v245
  %v374 = vcvt.s32.f32 %v246
  %v375 = vcvt.s32.f32 %v247
  %v376 = vcvt.s32.f32 %v248
  %v377 = vcvt.s32.f32 %v249
  %v378 = vcvt.s32.f32 %v250
  %v379 = vcvt.s32.f32 %v251
  %v380 = vcvt.s32.f32 %v252
  %v381 = vcvt.s32.f32 %v253
  %v382 = vcvt.s32.f32 %v254
  %v383 = vcvt.s32.f32 %v255
  %v384 = vcvt.s32.f32 %v256
  %v385 = vcvt.s32.f32 %v257
  %v386 = vcvt.s32.f32 %v258
  %v387 = vcvt.s32.f32 %v259
  %v388 = vcvt.s32.f32 %v260
  %v389 = vcvt.s32.f32 %v261
  %v390 = vcvt.s32.f32 %v262
  %v391 = vcvt.s32.f32 %v263
  %v392 = vcvt.s32.f32 %v264
  %v393 = vcvt.s32.f32 %v265
  %v394 = vcvt.s32.f32 %v266
  %v395 = vcvt.s32.f32 %v267
  %v396 = vcvt.s32.f32 %v268
  %v397 = vcvt.s32.f32 %v269
  %v398 = vcvt.s32.f32 %v270
  %v399 = vcvt.s32.f32 %v271
  %v400 = vcvt.s32.f32 %v272
  %v401 = vcvt.s32.f32 %v273
  %v402 = vcvt.s32.f32 %v274
  %v403 = vcvt.s32.f32 %v275
  %v404 = vcvt.s32.f32 %v276
  %v405 = vcvt.s32.f32 %v277
  %v406 = vcvt.s32.f32 %v278
  %v407 = vcvt.s32.f32 %v279
  %v408 = vcvt.s32.f32 %v280
  %v409 = vcvt.s32.f32 %v281
  %v410 = vcvt.s32.f32 %v282
  %v411 = vcvt.s32.f32 %v283
  %v412 = vcvt.s32.f32 %v284
  %v413 = vcvt.s32.f32 %v285
  %v414 = vcvt.s32.f32 %v286
  %v415 = vcvt.s32.f32 %v287
  %v416 = vcvt.s32.f32 %v288
  %v417 = vcvt.s32.f32 %v289
  %v418 = vcvt.s32.f32 %v290
  %v419 = vcvt.s32.f32 %v291
  %v420 = vcvt.s32.f32 %v292
  %v421 = vcvt.s32.f32 %v293
  %v422 = vcvt.s32.f32 %v294
  %v423 = vcvt.s32.f32 %v295
  %v424 = vcvt.s32.f32 %v296
  %v425 = vcvt.s32.f32 %v297
  %v426 = vcvt.s32.f32 %v298
  %v427 = vcvt.s32.f32 %v299
  %v428 = vcvt.s32.f32 %v300
  %v429 = vcvt.s32.f32 %v301
  %v430 = vcvt.s32.f32 %v302
  %v431 = vcvt.s32.f32 %v303
  %v432 = vcvt.s32.f32 %v304
  %v433 = vcvt.s32.f32 %v305
  %v434 = vcvt.s32.f32 %v306
  %v435 = vcvt.s32.f32 %v307
  %v436 = vcvt.s32.f32 %v308
  %v437 = vcvt.s32.f32 %v309
  %v438 = vcvt.s32.f32 %v310
  %v439 = vcvt.s32.f32 %v311
  %v440 = vcvt.s32.f32 %v312
  %v441 = vcvt.s32.f32 %v313
  %v442 = vcvt.s32.f32 %v314
  %v443 = vcvt.s32.f32 %v315
  %v444 = vcvt.s32.f32 %v316
  %v445 = vcvt.s32.f32 %v317
  %v446 = vcvt.s32.f32 %v318
  %v447 = vcvt.s32.f32 %v319
  %v448 = vcvt.s32.f32 %v320
  %v449 = vcvt.s32.f32 %v321
  %v450 = vcvt.s32.f32 %v322
  %v451 = vcvt.s32.f32 %v323
  %v452 = vcvt.s32.f32 %v324
  %v453 = vcvt.s32.f32 %v325
  %v454 = vcvt.s32.f32 %v326
  %v455 = vcvt.s32.f32 %v327
  %v456 = vcvt.s32.f32 %v328
  %v457 = vcvt.s32.f32 %v329
  %v458 = vcvt.s32.f32 %v330
  %v459 = vcvt.s32.f32 %v331
  %v460 = vcvt.s32.f32 %v332
  %v461 = vcvt.s32.f32 %v333
  %v462 = vcvt.s32.f32 %v334
  %v463 = vcvt.s32.f32 %v335
  %v464 = vcvt.s32.f32 %v336
  %v465 = vcvt.s32.f32 %v337
  %v466 = vcvt.s32.f32 %v338
  %v467 = vcvt.s32.f32 %v339
  %v468 = vcvt.s32.f32 %v340
  %v469 = vcvt.s32.f32 %v341
  %v470 = vcvt.s32.f32 %v342
  %v471 = vcvt.s32.f32 %v343
  %v472 = vcvt.s32.f32 %v344
  %v473 = vcvt.s32.f32 %v345
  %v474 = vcvt.s32.f32 %v346
  %v475 = vcvt.s32.f32 %v347
  %v476 = vcvt.s32.f32 %v348
  %v477 = vcvt.s32.f32 %v349
  %v478 = vcvt.s32.f32 %v350
  %v479 = vcvt.s32.f32 %v351
  %v480 = vcvt.s32.f32 %v352
  %v481 = vcvt.s32.f32 %v353
  %v482 = vcvt.s32.f32 %v354
  %v483 = vcvt.s32.f32 %v355
  %v484 = vcvt.s32.f32 %v356
  %v485 = vcvt.s32.f32 %v357
  %v486 = vcvt.s32.f32 %v358
  %v487 = vcvt.s32.f32 %v359
  %v488 = vcvt.s32.f32 %v360
  %v489 = vcvt.s32.f32 %v361
  %v490 = vcvt.s32.f32 %v362
  %v491 = vcvt.s32.f32 %v363
  %v492 = vcvt.s32.f32 %v364
  %v493 = vcvt.s32.f32 %v365
  %v494 = vcvt.s32.f32 %v366
  %v495 = vcvt.s32.f32 %v367
  %v496 = vpack.c.bf16 %v376, %v368
  %v497 = vpack.c.bf16 %v377, %v369
  %v498 = vpack.c.bf16 %v378, %v370
  %v499 = vpack.c.bf16 %v379, %v371
  %v500 = vpack.c.bf16 %v380, %v372
  %v501 = vpack.c.bf16 %v381, %v373
  %v502 = vpack.c.bf16 %v382, %v374
  %v503 = vpack.c.bf16 %v383, %v375
  %v504 = vpack.c.bf16 %v392, %v384
  %v505 = vpack.c.bf16 %v393, %v385
  %v506 = vpack.c.bf16 %v394, %v386
  %v507 = vpack.c.bf16 %v395, %v387
  %v508 = vpack.c.bf16 %v396, %v388
  %v509 = vpack.c.bf16 %v397, %v389
  %v510 = vpack.c.bf16 %v398, %v390
  %v511 = vpack.c.bf16 %v399, %v391
  %v512 = vpack.c.bf16 %v408, %v400
  %v513 = vpack.c.bf16 %v409, %v401
  %v514 = vpack.c.bf16 %v410, %v402
  %v515 = vpack.c.bf16 %v411, %v403
  %v516 = vpack.c.bf16 %v412, %v404
  %v517 = vpack.c.bf16 %v413, %v405
  %v518 = vpack.c.bf16 %v414, %v406
  %v519 = vpack.c.bf16 %v415, %v407
  %v520 = vpack.c.bf16 %v424, %v416
  %v521 = vpack.c.bf16 %v425, %v417
  %v522 = vpack.c.bf16 %v426, %v418
  %v523 = vpack.c.bf16 %v427, %v419
  %v524 = vpack.c.bf16 %v428, %v420
  %v525 = vpack.c.bf16 %v429, %v421
  %v526 = vpack.c.bf16 %v430, %v422
  %v527 = vpack.c.bf16 %v431, %v423
  %v528 = vpack.c.bf16 %v440, %v432
  %v529 = vpack.c.bf16 %v441, %v433
  %v530 = vpack.c.bf16 %v442, %v434
  %v531 = vpack.c.bf16 %v443, %v435
  %v532 = vpack.c.bf16 %v444, %v436
  %v533 = vpack.c.bf16 %v445, %v437
  %v534 = vpack.c.bf16 %v446, %v438
  %v535 = vpack.c.bf16 %v447, %v439
  %v536 = vpack.c.bf16 %v456, %v448
  %v537 = vpack.c.bf16 %v457, %v449
  %v538 = vpack.c.bf16 %v458, %v450
  %v539 = vpack.c.bf16 %v459, %v451
  %v540 = vpack.c.bf16 %v460, %v452
  %v541 = vpack.c.bf16 %v461, %v453
  %v542 = vpack.c.bf16 %v462, %v454
  %v543 = vpack.c.bf16 %v463, %v455
  %v544 = vpack.c.bf16 %v472, %v464
  %v545 = vpack.c.bf16 %v473, %v465
  %v546 = vpack.c.bf16 %v474, %v466
  %v547 = vpack.c.bf16 %v475, %v467
  %v548 = vpack.c.bf16 %v476, %v468
  %v549 = vpack.c.bf16 %v477, %v469
  %v550 = vpack.c.bf16 %v478, %v470
  %v551 = vpack.c.bf16 %v479, %v471
  %v552 = vpack.c.bf16 %v488, %v480
  %v553 = vpack.c.bf16 %v489, %v481
  %v554 = vpack.c.bf16 %v490, %v482
  %v555 = vpack.c.bf16 %v491, %v483
  %v556 = vpack.c.bf16 %v492, %v484
  %v557 = vpack.c.bf16 %v493, %v485
  %v558 = vpack.c.bf16 %v494, %v486
  %v559 = vpack.c.bf16 %v495, %v487
  %v560 = vld [vmem:[%s2] sm:$0xf]
  %v561 = vld [vmem:[%s2 + $0x4] sm:$0xf]
  %v564 = vunpack.c.l.b16 %v560
  %v565 = vunpack.c.l.b16 %v561
  %v566 = vpack.c.b16 %v565, %v564
  %568 = vmatprep.subr.bf16.mxu0 %v553
  %569 = vmatpush1.bf16.msra.mxu0 %v552
  %570 = vmatprep.subr.bf16.mxu0 %v545
  %571 = vmatpush1.bf16.msra.mxu0 %v544
  %572 = vmatprep.subr.bf16.mxu0 %v537
  %573 = vmatpush1.bf16.msra.mxu0 %v536
  %574 = vmatprep.subr.bf16.mxu0 %v529
  %575 = vmatpush1.bf16.msra.mxu0 %v528
  %576 = vmatprep.subr.bf16.mxu0 %v521
  %577 = vmatpush1.bf16.msra.mxu0 %v520
  %578 = vmatprep.subr.bf16.mxu0 %v513
  %579 = vmatpush1.bf16.msra.mxu0 %v512
  %580 = vmatprep.subr.bf16.mxu0 %v505
  %581 = vmatpush1.bf16.msra.mxu0 %v504
  %582 = vmatprep.subr.bf16.mxu0 %v497
  %583 = vmatpush1.bf16.msra.mxu0 %v496
  %584 = vmatprep.subr.bf16.mxu0 0
  %585 = vmatpush2.bf16.msra.mxu0 0
  %586 = vmatprep.subr.bf16.mxu0 0
  %587 = vmatpush2.bf16.msra.mxu0 0
  %588 = vmatprep.subr.bf16.mxu0 0
  %589 = vmatpush2.bf16.msra.mxu0 0
  %590 = vmatprep.subr.bf16.mxu0 0
  %591 = vmatpush2.bf16.msra.mxu0 0
  %592 = vmatprep.subr.bf16.mxu0 0
  %593 = vmatpush2.bf16.msra.mxu0 0
  %594 = vmatprep.subr.bf16.mxu0 0
  %595 = vmatpush2.bf16.msra.mxu0 0
  %596 = vmatprep.subr.bf16.mxu0 0
  %597 = vmatpush2.bf16.msra.mxu0 0
  %598 = vmatprep.subr.bf16.mxu0 0
  %599 = vmatpush2.bf16.msra.mxu0 0
  %600 = vmatprep.mubr.bf16.mxu0 0
  %601 = vmatmul.mubr.bf16.gmra.mxu0 %v566
  %v602 = vpop.f32.mrf.mxu0
  %v603 = vadd.f32 0.0, %v602
  %v604 = vpop.f32.mrf.mxu0
  %v605 = vadd.f32 0.0, %v604
  %v606 = vpop.f32.mrf.mxu0
  %v607 = vadd.f32 0.0, %v606
  %v608 = vpop.f32.mrf.mxu0
  %v609 = vadd.f32 0.0, %v608
  %610 = vdwg.mxu0
  %611 = vmatprep.subr.bf16.mxu0 %v555
  %612 = vmatpush1.bf16.msra.mxu0 %v554
  %613 = vmatprep.subr.bf16.mxu0 %v547
  %614 = vmatpush1.bf16.msra.mxu0 %v546
  %615 = vmatprep.subr.bf16.mxu0 %v539
  %616 = vmatpush1.bf16.msra.mxu0 %v538
  %617 = vmatprep.subr.bf16.mxu0 %v531
  %618 = vmatpush1.bf16.msra.mxu0 %v530
  %619 = vmatprep.subr.bf16.mxu0 %v523
  %620 = vmatpush1.bf16.msra.mxu0 %v522
  %621 = vmatprep.subr.bf16.mxu0 %v515
  %622 = vmatpush1.bf16.msra.mxu0 %v514
  %623 = vmatprep.subr.bf16.mxu0 %v507
  %624 = vmatpush1.bf16.msra.mxu0 %v506
  %625 = vmatprep.subr.bf16.mxu0 %v499
  %626 = vmatpush1.bf16.msra.mxu0 %v498
  %627 = vmatprep.subr.bf16.mxu0 0
  %628 = vmatpush2.bf16.msra.mxu0 0
  %629 = vmatprep.subr.bf16.mxu0 0
  %630 = vmatpush2.bf16.msra.mxu0 0
  %631 = vmatprep.subr.bf16.mxu0 0
  %632 = vmatpush2.bf16.msra.mxu0 0
  %633 = vmatprep.subr.bf16.mxu0 0
  %634 = vmatpush2.bf16.msra.mxu0 0
  %635 = vmatprep.subr.bf16.mxu0 0
  %636 = vmatpush2.bf16.msra.mxu0 0
  %637 = vmatprep.subr.bf16.mxu0 0
  %638 = vmatpush2.bf16.msra.mxu0 0
  %639 = vmatprep.subr.bf16.mxu0 0
  %640 = vmatpush2.bf16.msra.mxu0 0
  %641 = vmatprep.subr.bf16.mxu0 0
  %642 = vmatpush2.bf16.msra.mxu0 0
  %643 = vmatprep.mubr.bf16.mxu0 0
  %644 = vmatmul.mubr.bf16.gmra.mxu0 %v566
  %v645 = vpop.f32.mrf.mxu0
  %v646 = vadd.f32 0.0, %v645
  %v647 = vpop.f32.mrf.mxu0
  %v648 = vadd.f32 0.0, %v647
  %v649 = vpop.f32.mrf.mxu0
  %v650 = vadd.f32 0.0, %v649
  %v651 = vpop.f32.mrf.mxu0
  %v652 = vadd.f32 0.0, %v651
  %653 = vdwg.mxu0
  %654 = vmatprep.subr.bf16.mxu0 %v557
  %655 = vmatpush1.bf16.msra.mxu0 %v556
  %656 = vmatprep.subr.bf16.mxu0 %v549
  %657 = vmatpush1.bf16.msra.mxu0 %v548
  %658 = vmatprep.subr.bf16.mxu0 %v541
  %659 = vmatpush1.bf16.msra.mxu0 %v540
  %660 = vmatprep.subr.bf16.mxu0 %v533
  %661 = vmatpush1.bf16.msra.mxu0 %v532
  %662 = vmatprep.subr.bf16.mxu0 %v525
  %663 = vmatpush1.bf16.msra.mxu0 %v524
  %664 = vmatprep.subr.bf16.mxu0 %v517
  %665 = vmatpush1.bf16.msra.mxu0 %v516
  %666 = vmatprep.subr.bf16.mxu0 %v509
  %667 = vmatpush1.bf16.msra.mxu0 %v508
  %668 = vmatprep.subr.bf16.mxu0 %v501
  %669 = vmatpush1.bf16.msra.mxu0 %v500
  %670 = vmatprep.subr.bf16.mxu0 0
  %671 = vmatpush2.bf16.msra.mxu0 0
  %672 = vmatprep.subr.bf16.mxu0 0
  %673 = vmatpush2.bf16.msra.mxu0 0
  %674 = vmatprep.subr.bf16.mxu0 0
  %675 = vmatpush2.bf16.msra.mxu0 0
  %676 = vmatprep.subr.bf16.mxu0 0
  %677 = vmatpush2.bf16.msra.mxu0 0
  %678 = vmatprep.subr.bf16.mxu0 0
  %679 = vmatpush2.bf16.msra.mxu0 0
  %680 = vmatprep.subr.bf16.mxu0 0
  %681 = vmatpush2.bf16.msra.mxu0 0
  %682 = vmatprep.subr.bf16.mxu0 0
  %683 = vmatpush2.bf16.msra.mxu0 0
  %684 = vmatprep.subr.bf16.mxu0 0
  %685 = vmatpush2.bf16.msra.mxu0 0
  %686 = vmatprep.mubr.bf16.mxu0 0
  %687 = vmatmul.mubr.bf16.gmra.mxu0 %v566
  %v688 = vpop.f32.mrf.mxu0
  %v689 = vadd.f32 0.0, %v688
  %v690 = vpop.f32.mrf.mxu0
  %v691 = vadd.f32 0.0, %v690
  %v692 = vpop.f32.mrf.mxu0
  %v693 = vadd.f32 0.0, %v692
  %v694 = vpop.f32.mrf.mxu0
  %v695 = vadd.f32 0.0, %v694
  %696 = vdwg.mxu0
  %697 = vmatprep.subr.bf16.mxu0 %v559
  %698 = vmatpush1.bf16.msra.mxu0 %v558
  %699 = vmatprep.subr.bf16.mxu0 %v551
  %700 = vmatpush1.bf16.msra.mxu0 %v550
  %701 = vmatprep.subr.bf16.mxu0 %v543
  %702 = vmatpush1.bf16.msra.mxu0 %v542
  %703 = vmatprep.subr.bf16.mxu0 %v535
  %704 = vmatpush1.bf16.msra.mxu0 %v534
  %705 = vmatprep.subr.bf16.mxu0 %v527
  %706 = vmatpush1.bf16.msra.mxu0 %v526
  %707 = vmatprep.subr.bf16.mxu0 %v519
  %708 = vmatpush1.bf16.msra.mxu0 %v518
  %709 = vmatprep.subr.bf16.mxu0 %v511
  %710 = vmatpush1.bf16.msra.mxu0 %v510
  %711 = vmatprep.subr.bf16.mxu0 %v503
  %712 = vmatpush1.bf16.msra.mxu0 %v502
  %713 = vmatprep.subr.bf16.mxu0 0
  %714 = vmatpush2.bf16.msra.mxu0 0
  %715 = vmatprep.subr.bf16.mxu0 0
  %716 = vmatpush2.bf16.msra.mxu0 0
  %717 = vmatprep.subr.bf16.mxu0 0
  %718 = vmatpush2.bf16.msra.mxu0 0
  %719 = vmatprep.subr.bf16.mxu0 0
  %720 = vmatpush2.bf16.msra.mxu0 0
  %721 = vmatprep.subr.bf16.mxu0 0
  %722 = vmatpush2.bf16.msra.mxu0 0
  %723 = vmatprep.subr.bf16.mxu0 0
  %724 = vmatpush2.bf16.msra.mxu0 0
  %725 = vmatprep.subr.bf16.mxu0 0
  %726 = vmatpush2.bf16.msra.mxu0 0
  %727 = vmatprep.subr.bf16.mxu0 0
  %728 = vmatpush2.bf16.msra.mxu0 0
  %729 = vmatprep.mubr.bf16.mxu0 0
  %730 = vmatmul.mubr.bf16.gmra.mxu0 %v566
  %v731 = vpop.f32.mrf.mxu0
  %v732 = vadd.f32 0.0, %v731
  %v733 = vpop.f32.mrf.mxu0
  %v734 = vadd.f32 0.0, %v733
  %v735 = vpop.f32.mrf.mxu0
  %v736 = vadd.f32 0.0, %v735
  %v737 = vpop.f32.mrf.mxu0
  %v738 = vadd.f32 0.0, %v737
  %739 = vdwg.mxu0
  %v740 = vmul.f32 %v603, %v689
  %v741 = vmul.f32 %v605, %v691
  %v742 = vmul.f32 %v646, %v732
  %v743 = vmul.f32 %v648, %v734
  %v744 = vmul.f32 %v607, %v693
  %v745 = vmul.f32 %v609, %v695
  %v746 = vmul.f32 %v650, %v736
  %v747 = vmul.f32 %v652, %v738
  %v748 = vadd.f32 %v740, %v744
  %v749 = vrot.slane %v748, 4
  %v750 = vadd.f32 %v748, %v749
  %v751 = vrot.slane %v750, 2
  %v752 = vadd.f32 %v750, %v751
  %v753 = vrot.slane %v752, 1
  %v754 = vadd.f32 %v752, %v753
  %v755 = vadd.f32 %v741, %v745
  %v756 = vrot.slane %v755, 4
  %v757 = vadd.f32 %v755, %v756
  %v758 = vrot.slane %v757, 2
  %v759 = vadd.f32 %v757, %v758
  %v760 = vrot.slane %v759, 1
  %v761 = vadd.f32 %v759, %v760
  %v762 = vadd.f32 %v742, %v746
  %v763 = vrot.slane %v762, 4
  %v764 = vadd.f32 %v762, %v763
  %v765 = vrot.slane %v764, 2
  %v766 = vadd.f32 %v764, %v765
  %v767 = vrot.slane %v766, 1
  %v768 = vadd.f32 %v766, %v767
  %v769 = vadd.f32 %v743, %v747
  %v770 = vrot.slane %v769, 4
  %v771 = vadd.f32 %v769, %v770
  %v772 = vrot.slane %v771, 2
  %v773 = vadd.f32 %v771, %v772
  %v774 = vrot.slane %v773, 1
  %v775 = vadd.f32 %v773, %v774
  %v776 = vsub.f32 0.0, %v754
  %v777 = vsub.f32 0.0, %v761
  %v778 = vsub.f32 0.0, %v768
  %v779 = vsub.f32 0.0, %v775
  %v780 = vmul.f32 %v776, 1.442695
  %v781 = vpow.pop %v780
  %v782 = vmul.f32 %v777, 1.442695
  %v783 = vpow.pop %v782
  %v784 = vmul.f32 %v778, 1.442695
  %v785 = vpow.pop %v784
  %v786 = vmul.f32 %v779, 1.442695
  %v787 = vpow.pop %v786
  %v788 = vadd.f32 %v781, 1.0
  %v789 = vadd.f32 %v783, 1.0
  %v790 = vadd.f32 %v785, 1.0
  %v791 = vadd.f32 %v787, 1.0
  %v792 = vrcp.pop %v788
  %v793 = vrcp.pop %v789
  %v794 = vrcp.pop %v790
  %v795 = vrcp.pop %v791
  %v800 = vcombine.low %v792, %v793
  %v801 = vcombine.low %v794, %v795
  %v803 = vunpack.c.l.s4 1966171168
  %v804 = vunpack.c.0.s8 %v803
  %v805 = vlaneseq
  %v806 = vshrl.u32 %v805, 7
  %v807 = vsub.s32 %v804, %v806
  %v808 = vrot.slane %v800, %v807
  %v810 = vunpack.c.l.s4 1966171168
  %v811 = vunpack.c.0.s8 %v810
  %v812 = vlaneseq
  %v813 = vshrl.u32 %v812, 7
  %v814 = vsub.s32 %v811, %v813
  %v815 = vrot.slane %v801, %v814
  %v816 = vcombine.low %v808, %v815
  %v818 = vunpack.c.l.s4 1966171168
  %v819 = vunpack.c.0.s8 %v818
  %v820 = vlaneseq
  %v821 = vshrl.u32 %v820, 7
  %v822 = vsub.s32 %v819, %v821
  %v823 = vrot.slane %v816, %v822
  %v825 = vlaneseq
  %vm826 = vcmp.ge.s32.totalorder %v825, 0
  %vm827 = vcmp.lt.s32.totalorder %v825, 512
  %vm828 = vmand %vm826, %vm827
  %829 = vst.msk [vmem:[%s3] sm:$0xf] %vm828, %v823
  // Predicated region
  $region14: #{vgae_decoder.1} parent=0 // pred_check
    _
  $region15: #{vgae_decoder.1} parent=0 // pred_check_branch
    %831 = sbr.rel (0) target = $region17
  $region16: #{vgae_decoder.1} parent=0 // pred_region
    _
  $region17: #{vgae_decoder.1} parent=0 // pred_fallthru
    _
  // Predicated region
  $region18: #{vgae_decoder.1} parent=0 // pred_check
    _
  $region19: #{vgae_decoder.1} parent=0 // pred_check_branch
    %833 = sbr.rel (0) target = $region21
  $region20: #{vgae_decoder.1} parent=0 // pred_region
    _
  $region21: #{vgae_decoder.1} parent=0 // pred_fallthru
    _

</llo_original>
